<compile_context>
chip_gen: v7x
topology: tpu7x:2x2x1
jax: 0.10.0
libtpu: 0.0.40
codegen_flags: <defaults>
</compile_context>

<pallas_src>
import jax
import jax.numpy as jnp
from jax.experimental import pallas as pl
from jax.experimental.pallas import tpu as pltpu

PAD_TOKEN_ID = 0       # tokenizer.pad_token_id in the synthetic setup
PREFIX_DUMMY_ID = 1    # non-pad id used for prefix positions inside new_input_ids


def _round_up(x, m):
    return (x + m - 1) // m * m


# ---------------------------------------------------------------------------
# Kernel 1: embedding lookup as a one-hot matmul on the MXU (single launch).
#           one_hot(ids) (R, V) @ wte (V, D) -> (R, D); f32 one-hot => exact gather.
# ---------------------------------------------------------------------------
def _embed_onehot_kernel(ids_ref, wte_ref, out_ref):
    ids = ids_ref[...]                                              # (R, 1) int32
    rows = ids.shape[0]
    vocab = wte_ref.shape[0]
    col = jax.lax.broadcasted_iota(jnp.int32, (rows, vocab), 1)
    onehot = (col == ids).astype(wte_ref.dtype)                     # exact 0/1 in f32
    out_ref[...] = jnp.dot(onehot, wte_ref[...],
                           preferred_element_type=jnp.float32).astype(out_ref.dtype)


def embed_tokens(ids_flat, wte):
    # TODO(synk): for large vocabularies tile V (or use manual row DMAs); the one-hot
    #             matmul is only the right call because V is tiny (256) here.
    R = int(ids_flat.shape[0])
    V, D = wte.shape
    R_pad = _round_up(R, 8)
    ids_pad = jnp.zeros((R_pad, 1), jnp.int32).at[:R, 0].set(ids_flat.astype(jnp.int32))
    out = pl.pallas_call(
        _embed_onehot_kernel,
        out_shape=jax.ShapeDtypeStruct((R_pad, D), wte.dtype),
        grid=(1,),
        in_specs=[pl.BlockSpec((R_pad, 1), lambda i: (0, 0)),
                  pl.BlockSpec((V, D), lambda i: (0, 0))],
        out_specs=pl.BlockSpec((R_pad, D), lambda i: (0, 0)),
    )(ids_pad, wte)
    return out[:R]


# ---------------------------------------------------------------------------
# Kernel 2: fused tied LM head + per-row cross entropy ("flash-CE").
#   grid = (M tiles, vocab tiles); for each (m, n): logits tile = x(m) @ w(n) on the MXU
#   (bf16 in, f32 acc), written to HBM once, and simultaneously folded into an online
#   logsumexp / target-logit accumulator; per-row NLL emitted at the last vocab tile.
# ---------------------------------------------------------------------------
def _lmhead_ce_kernel(x_ref, w_ref, tgt_ref, logits_ref, nll_ref, m_scr, l_scr, t_scr):
    n = pl.program_id(1)
    num_n = pl.num_programs(1)
    tn = logits_ref.shape[-1]

    # MXU matmul; the f32 logits output block is the only "accumulator" we need.
    logits = jnp.dot(x_ref[...], w_ref[...], preferred_element_type=jnp.float32)
    logits_ref[...] = logits

    @pl.when(n == 0)
    def _():
        m_scr[...] = jnp.full_like(m_scr, -jnp.inf)
        l_scr[...] = jnp.zeros_like(l_scr)
        t_scr[...] = jnp.zeros_like(t_scr)

    # Online logsumexp over vocab tiles (never re-reads logits from HBM).
    tile_max = jnp.max(logits, axis=-1, keepdims=True)              # (tm, 1)
    m_new = jnp.maximum(m_scr[...], tile_max)
    corr = jnp.exp(m_scr[...] - m_new)
    l_scr[...] = corr * l_scr[...] + jnp.sum(jnp.exp(logits - m_new),
                                             axis=-1, keepdims=True)
    m_scr[...] = m_new

    # Target logit: only the vocab tile containing the target contributes.
    col = jax.lax.broadcasted_iota(jnp.int32, logits.shape, 1) + n * tn
    t_scr[...] += jnp.sum(jnp.where(col == tgt_ref[...], logits, 0.0),
                          axis=-1, keepdims=True)

    @pl.when(n == num_n - 1)
    def _():
        nll_ref[...] = m_scr[...] + jnp.log(l_scr[...]) - t_scr[...]


def lm_head_and_ce(x, w_t, row_targets, *, tm=128, tn=256):
    """Returns (logits = x @ w_t  in f32,  nll[r] = logsumexp(logits[r]) - logits[r, tgt[r]])."""
    M, D = x.shape
    D2, V = w_t.shape
    assert D == D2
    tn = min(tn, V)
    assert V % tn == 0
    tm = tm if M >= tm else _round_up(M, 8)
    M_pad = _round_up(M, tm)

    x_p = x.astype(jnp.bfloat16)
    if M_pad != M:
        x_p = jnp.pad(x_p, ((0, M_pad - M), (0, 0)))                # zero rows -> finite, discarded
    w_b = w_t.astype(jnp.bfloat16)
    tgt = jnp.zeros((M_pad, 1), jnp.int32).at[:M, 0].set(row_targets.astype(jnp.int32))

    logits, nll = pl.pallas_call(
        _lmhead_ce_kernel,
        out_shape=(jax.ShapeDtypeStruct((M_pad, V), jnp.float32),
                   jax.ShapeDtypeStruct((M_pad, 1), jnp.float32)),
        grid_spec=pltpu.PrefetchScalarGridSpec(
            num_scalar_prefetch=0,
            grid=(M_pad // tm, V // tn),
            in_specs=[pl.BlockSpec((tm, D), lambda m, n: (m, 0)),    # resident across n
                      pl.BlockSpec((D, tn), lambda m, n: (0, n)),
                      pl.BlockSpec((tm, 1), lambda m, n: (m, 0))],
            out_specs=[pl.BlockSpec((tm, tn), lambda m, n: (m, n)),
                       pl.BlockSpec((tm, 1), lambda m, n: (m, 0))],
            scratch_shapes=[pltpu.VMEM((tm, 1), jnp.float32),        # running max
                            pltpu.VMEM((tm, 1), jnp.float32),        # running sum-exp
                            pltpu.VMEM((tm, 1), jnp.float32)]),      # target logit
        compiler_params=pltpu.CompilerParams(
            dimension_semantics=("parallel", "arbitrary")),
    )(x_p, w_b, tgt)
    return logits[:M], nll[:M, 0]


# ---------------------------------------------------------------------------
# Kernel 3: masked cross entropy on the B last-position rows (token loss).
# ---------------------------------------------------------------------------
def _masked_ce_kernel(logits_ref, tgt_ref, mask_ref, out_ref):
    logits = logits_ref[...].astype(jnp.float32)                    # (R, V)
    mask = mask_ref[...] > 0.0                                      # (1, V)
    masked = jnp.where(mask, logits, -jnp.inf)                      # torch.where(mask, logits, -inf)
    m = jnp.max(masked, axis=-1, keepdims=True)
    lse = m + jnp.log(jnp.sum(jnp.exp(masked - m), axis=-1, keepdims=True))
    col = jax.lax.broadcasted_iota(jnp.int32, masked.shape, 1)
    tgt_logit = jnp.sum(jnp.where(col == tgt_ref[...], masked, 0.0),
                        axis=-1, keepdims=True)
    out_ref[...] = lse - tgt_logit                                  # +inf if target masked (== torch)


def masked_token_ce(logits_rows, targets, answer_mask):
    R, V = logits_rows.shape
    out = pl.pallas_call(
        _masked_ce_kernel,
        out_shape=jax.ShapeDtypeStruct((R, 1), jnp.float32),
        grid=(1,),
        in_specs=[pl.BlockSpec((R, V), lambda i: (0, 0)),
                  pl.BlockSpec((R, 1), lambda i: (0, 0)),
                  pl.BlockSpec((1, V), lambda i: (0, 0))],
        out_specs=pl.BlockSpec((R, 1), lambda i: (0, 0)),
    )(logits_rows,
      targets.reshape(R, 1).astype(jnp.int32),
      answer_mask.reshape(1, V).astype(jnp.float32))
    return out[:, 0]


# ---------------------------------------------------------------------------
# PrefixModel + PrefixLoss (synthetic, deterministic parameters)
# ---------------------------------------------------------------------------
class PrefixModelPallas:
    def __init__(self, key, *, vocab_size=256, hidden_dim=128,
                 num_prefix_tokens=4, gamma=0.5):
        self.vocab_size = vocab_size
        self.token_embedding_dim = hidden_dim
        self.num_prefix_tokens = num_prefix_tokens
        self.gamma = gamma
        # token_embedding.weight (V, D), deterministic init
        self.wte = 0.02 * jax.random.normal(key, (vocab_size, hidden_dim), dtype=jnp.float32)
        # tied LM-head weight, pre-transposed + bf16 for the MXU (f32 accumulation in-kernel)
        self.wte_t_bf16 = self.wte.T.astype(jnp.bfloat16)
        # init_continuous_prefix: mean over vocab, repeated num_tokens times (param setup = glue)
        self.prefix_embedding = jnp.tile(
            jnp.mean(self.wte, axis=0, keepdims=True), (num_prefix_tokens, 1))

    # prompt-tuning style embed_input_ids (abstract in the torch class)
    def embed_input_ids(self, input_ids):
        B, S = input_ids.shape
        P, D = self.prefix_embedding.shape
        tok_emb = embed_tokens(input_ids.reshape(-1), self.wte).reshape(B, S, D)
        prefix = jnp.broadcast_to(self.prefix_embedding[None], (B, P, D))
        embeddings = jnp.concatenate([prefix, tok_emb], axis=1)
        prefix_ids = jnp.full((B, P), PREFIX_DUMMY_ID, dtype=jnp.int32)
        new_input_ids = jnp.concatenate([prefix_ids, input_ids.astype(jnp.int32)], axis=1)
        return new_input_ids, embeddings

    def _lm_head(self, embeddings, row_targets):
        B, L, D = embeddings.shape
        logits_flat, nll_rows = lm_head_and_ce(
            embeddings.reshape(B * L, D), self.wte_t_bf16, row_targets)
        return logits_flat.reshape(B, L, self.vocab_size), nll_rows.reshape(B, L)

    def forward(self, input_ids):
        new_input_ids, embeddings = self.embed_input_ids(input_ids)
        attention_mask = new_input_ids != PAD_TOKEN_ID  # ~(ids == pad_token_id)
        # TODO(synk): the pretrained transformers.PreTrainedModel backbone has no clean Pallas
        #             equivalent here; it is replaced by a tied-embedding linear LM head, which
        #             also means attention_mask is computed but not consumed.
        B, L, _ = embeddings.shape
        logits, _ = self._lm_head(embeddings, jnp.zeros((B * L,), jnp.int32))
        return new_input_ids, logits, attention_mask

    # PrefixLoss.__call__ : token loss + gamma * fluency (log-ppl) loss
    def loss(self, input_ids, next_token_ids, answer_mask):
        new_input_ids, embeddings = self.embed_input_ids(input_ids)
        B, L, _ = embeddings.shape

        # Fluency targets: row (b, l) predicts new_input_ids[b, l+1]; last position unused.
        fl_targets = jnp.concatenate(
            [new_input_ids[:, 1:], jnp.zeros((B, 1), jnp.int32)], axis=1).reshape(-1)

        # Fused LM head + per-row CE: logits written to HBM once, fluency CE computed in-pass.
        logits, nll = self._lm_head(embeddings, fl_targets)

        # _compute_fluency_loss == compute_log_ppl_loss(logits, new_input_ids), mean over B*(L-1)
        fluency_loss = jnp.mean(nll[:, :L - 1])

        # _compute_token_loss on logits[:, -1, :] with answer_mask (only B rows)
        token_loss = jnp.mean(masked_token_ce(logits[:, -1, :], next_token_ids, answer_mask))

        loss = token_loss + self.gamma * fluency_loss
        return loss, new_input_ids, logits


if __name__ == "__main__":
    B, S, P, D, V = 2, 8, 4, 128, 256
    key = jax.random.PRNGKey(0)
    k_emb, k_ids, k_next = jax.random.split(key, 3)

    model = PrefixModelPallas(k_emb, vocab_size=V, hidden_dim=D,
                              num_prefix_tokens=P, gamma=0.5)

    input_ids = jax.random.randint(k_ids, (B, S), 2, V, dtype=jnp.int32)   # no pad tokens
    next_token_ids = jax.random.randint(k_next, (B,), 0, 64, dtype=jnp.int32)
    answer_mask = jnp.arange(V) < 64                                       # possible-answer mask

    loss, new_input_ids, logits = model.loss(input_ids, next_token_ids, answer_mask)
    jax.block_until_ready((loss, new_input_ids, logits))

    assert new_input_ids.shape == (B, P + S)
    assert logits.shape == (B, P + S, V)
    assert jnp.isfinite(loss)
    print("KERNEL_OK")
</pallas_src>

<mosaic_0001>
module attributes {stable_mosaic.version = 11 : i64} {
  func.func @_embed_onehot_kernel(%arg0: i32, %arg1: memref<16x1xi32, #tpu.memory_space<vmem>>, %arg2: memref<256x128xf32, #tpu.memory_space<vmem>>, %arg3: memref<16x128xf32, #tpu.memory_space<vmem>>) attributes {dimension_semantics = [#tpu.dimension_semantics<arbitrary>], iteration_bounds = array<i64: 1>, scalar_prefetch = 0 : i64, scratch_operands = 0 : i64, tpu.core_type = #tpu.core_type<tc>, window_params = [{pipeline_mode = #tpu.pipeline_mode<synchronous>, transform_indices = @transform_0, window_bounds = array<i64: 16, 1>}, {pipeline_mode = #tpu.pipeline_mode<synchronous>, transform_indices = @transform_1, window_bounds = array<i64: 256, 128>}, {pipeline_mode = #tpu.pipeline_mode<synchronous>, transform_indices = @transform_2, window_bounds = array<i64: 16, 128>}]} {
    %c0 = arith.constant 0 : index
    %c0_0 = arith.constant 0 : index
    %0 = vector.load %arg1[%c0, %c0_0] : memref<16x1xi32, #tpu.memory_space<vmem>>, vector<16x1xi32>
    %1 = tpu.iota {dimensions = array<i32: 1>} : vector<16x256xi32>
    %2 = vector.broadcast %0 : vector<16x1xi32> to vector<16x256xi32>
    %3 = arith.cmpi eq, %1, %2 : vector<16x256xi32>
    %4 = arith.extui %3 : vector<16x256xi1> to vector<16x256xi32>
    %5 = arith.sitofp %4 : vector<16x256xi32> to vector<16x256xf32>
    %c0_1 = arith.constant 0 : index
    %c0_2 = arith.constant 0 : index
    %6 = vector.load %arg2[%c0_1, %c0_2] : memref<256x128xf32, #tpu.memory_space<vmem>>, vector<256x128xf32>
    %cst = arith.constant dense<0.000000e+00> : vector<16x128xf32>
    %7 = tpu.matmul %5, %6, %cst {dimension_numbers = #tpu.dot_dimension_numbers<[1], [0], [0], [1], [0, 0, 1, 1], [], []>} : vector<16x256xf32>, vector<256x128xf32>, vector<16x128xf32> -> vector<16x128xf32>
    %c0_3 = arith.constant 0 : index
    %c0_4 = arith.constant 0 : index
    %8 = vector.load %arg3[%c0_3, %c0_4] : memref<16x128xf32, #tpu.memory_space<vmem>>, vector<16x128xf32>
    tpu.vector_store %arg3[%c0_3, %c0_4], %7 {strides = array<i32>} : memref<16x128xf32, #tpu.memory_space<vmem>>, vector<16x128xf32>,
    return
  }
  func.func @transform_0(%arg0: i32) -> (i32, i32) {
    %c0_i32 = arith.constant 0 : i32
    %c0_i32_0 = arith.constant 0 : i32
    %c0_i32_1 = arith.constant 0 : i32
    return %c0_i32, %c0_i32_0 : i32, i32
  }
  func.func @transform_1(%arg0: i32) -> (i32, i32) {
    %c0_i32 = arith.constant 0 : i32
    %c0_i32_0 = arith.constant 0 : i32
    %c0_i32_1 = arith.constant 0 : i32
    return %c0_i32, %c0_i32_0 : i32, i32
  }
  func.func @transform_2(%arg0: i32) -> (i32, i32) {
    %c0_i32 = arith.constant 0 : i32
    %c0_i32_0 = arith.constant 0 : i32
    %c0_i32_1 = arith.constant 0 : i32
    return %c0_i32, %c0_i32_0 : i32, i32
  }
}

</mosaic_0001>

<llo_original>
// kernel: tpu_custom_call.1
$region0: #{tpu_custom_call.1}
  #allocation0 [shape = 'u32[]', space=smem, size = 0x4, offset = 0x4, fixed_abs, tag = 'smem constant byte address 0x4 - core index']
  #allocation1 [shape = 'u32[144,128]{1,0:T(1,128)}', space=vmem, size = 0x12000, scoped, tag = 'internal scratch']
  %s0 = inlined_call_operand.vmem [shape: s32[16,1], index: 0, kind: input, shape index: {}]
  %s1 = inlined_call_operand.hbm [shape: f32[256,128], index: 1, kind: input, shape index: {}]
  %s2 = inlined_call_operand.hbm [shape: f32[16,128], index: 2, kind: output, shape index: {}]
  %s3 = sld [smem:[#allocation0]]
  $region22: #{tpu_custom_call.1} parent=0
    _
  %s5 = ssub.s32 1, %s3
  %s6 = scalar_select 0, %s5, %s3
  $region1: #{tpu_custom_call.1} parent=0
    #allocation2 [shape = 'u8[131072]{0}', space=vmem, size = 0x20000, scoped, tag = 'input window, operand 1, single buffered']
    #allocation3 [shape = 's32[1]{0}', space=sflag, size = 0x4, scoped, tag = 'scoped memory for tpu_custom_call.1']
    #allocation4 [shape = 's32[1]{0}', space=sflag, size = 0x4, scoped, tag = 'scoped memory for tpu_custom_call.1']
    #allocation5 [shape = 'u8[8192]{0}', space=vmem, size = 0x2000, scoped, tag = 'output window, operand 0, single buffered']
    %7 = vsyncpa [#allocation3], 0
    %8 = vsyncpa [#allocation4], 0
    // Predicated region
    $region2: #{tpu_custom_call.1} parent=1 // pred_check
      _
    $region3: #{tpu_custom_call.1} parent=1 // pred_check_branch
      %10 = sbr.rel (0) target = $region5
    $region4: #{tpu_custom_call.1} parent=1 // pred_region
      _
    $region5: #{tpu_custom_call.1} parent=1 // pred_fallthru
      _
    // Predicated region
    $region6: #{tpu_custom_call.1} parent=1 // pred_check
      _
    $region7: #{tpu_custom_call.1} parent=1 // pred_check_branch
      %12 = sbr.rel (0) target = $region9
    $region8: #{tpu_custom_call.1} parent=1 // pred_region
      %s14 = ssub.s32 4096, 4096
      %15 = vsyncadd [#allocation3], %s14
      %s16 = sshll.u32 [#allocation2], 4
      %s17 = int_to_ptr.vmem [resolvable:$true] %s16
      %22 = dma.hbm_to_vmem [thread:$0]  %s1, 4096, %s17, [#allocation3], 128, 128, 8
    $region9: #{tpu_custom_call.1} parent=1 // pred_fallthru
      _
    // Predicated region
    $region10: #{tpu_custom_call.1} parent=1 // pred_check
      _
    $region11: #{tpu_custom_call.1} parent=1 // pred_check_branch
      %24 = sbr.rel (0) target = $region13
    $region12: #{tpu_custom_call.1} parent=1 // pred_region
      %25 = dma.done [#allocation3], 4096
    $region13: #{tpu_custom_call.1} parent=1 // pred_fallthru
      _
    %v26 = vld [vmem:[%s0] sm:$0xff]
    %v27 = vld [vmem:[%s0 + $0x8] sm:$0xff]
    %v28 = vlaneseq
    %v29 = vand.u32 %v28, 127
    %v30 = vadd.s32 %v29, 128
    %31 = vset.pattern.permute.xlu0 0
    %32 = vperm.xlu0 %31, %v26
    %v33 = vpop.permute.xlu0 %32
    %34 = vset.pattern.permute.xlu0 0
    %35 = vperm.xlu0 %34, %v27
    %v36 = vpop.permute.xlu0 %35
    %vm37 = vcmp.eq.s32.totalorder %v29, %v33
    %vm38 = vcmp.eq.s32.totalorder %v30, %v33
    %vm39 = vcmp.eq.s32.totalorder %v29, %v36
    %vm40 = vcmp.eq.s32.totalorder %v30, %v36
    %v41 = vsel %vm37, 1, 0
    %v42 = vsel %vm38, 1, 0
    %v43 = vsel %vm39, 1, 0
    %v44 = vsel %vm40, 1, 0
    %v45 = vcvt.s32.f32 %v41
    %v46 = vcvt.s32.f32 %v42
    %v47 = vcvt.s32.f32 %v43
    %v48 = vcvt.s32.f32 %v44
    %v49 = vld [vmem:[#allocation2] sm:$0xff]
    %v50 = vld [vmem:[#allocation2 + $0x8] sm:$0xff]
    %v51 = vld [vmem:[#allocation2 + $0x10] sm:$0xff]
    %v52 = vld [vmem:[#allocation2 + $0x18] sm:$0xff]
    %v53 = vld [vmem:[#allocation2 + $0x20] sm:$0xff]
    %v54 = vld [vmem:[#allocation2 + $0x28] sm:$0xff]
    %v55 = vld [vmem:[#allocation2 + $0x30] sm:$0xff]
    %v56 = vld [vmem:[#allocation2 + $0x38] sm:$0xff]
    %v57 = vld [vmem:[#allocation2 + $0x40] sm:$0xff]
    %v58 = vld [vmem:[#allocation2 + $0x48] sm:$0xff]
    %v59 = vld [vmem:[#allocation2 + $0x50] sm:$0xff]
    %v60 = vld [vmem:[#allocation2 + $0x58] sm:$0xff]
    %v61 = vld [vmem:[#allocation2 + $0x60] sm:$0xff]
    %v62 = vld [vmem:[#allocation2 + $0x68] sm:$0xff]
    %v63 = vld [vmem:[#allocation2 + $0x70] sm:$0xff]
    %v64 = vld [vmem:[#allocation2 + $0x78] sm:$0xff]
    %v65 = vld [vmem:[#allocation2 + $0x80] sm:$0xff]
    %v66 = vld [vmem:[#allocation2 + $0x88] sm:$0xff]
    %v67 = vld [vmem:[#allocation2 + $0x90] sm:$0xff]
    %v68 = vld [vmem:[#allocation2 + $0x98] sm:$0xff]
    %v69 = vld [vmem:[#allocation2 + $0xa0] sm:$0xff]
    %v70 = vld [vmem:[#allocation2 + $0xa8] sm:$0xff]
    %v71 = vld [vmem:[#allocation2 + $0xb0] sm:$0xff]
    %v72 = vld [vmem:[#allocation2 + $0xb8] sm:$0xff]
    %v73 = vld [vmem:[#allocation2 + $0xc0] sm:$0xff]
    %v74 = vld [vmem:[#allocation2 + $0xc8] sm:$0xff]
    %v75 = vld [vmem:[#allocation2 + $0xd0] sm:$0xff]
    %v76 = vld [vmem:[#allocation2 + $0xd8] sm:$0xff]
    %v77 = vld [vmem:[#allocation2 + $0xe0] sm:$0xff]
    %v78 = vld [vmem:[#allocation2 + $0xe8] sm:$0xff]
    %v79 = vld [vmem:[#allocation2 + $0xf0] sm:$0xff]
    %v80 = vld [vmem:[#allocation2 + $0xf8] sm:$0xff]
    %81 = vmatprep.subr.mxu0 0.0
    %82 = vmatpush1.msra.mxu0 %v49
    %83 = vmatprep.subr.mxu0 0.0
    %84 = vmatpush1.msra.mxu0 %v50
    %85 = vmatprep.subr.mxu0 0.0
    %86 = vmatpush1.msra.mxu0 %v51
    %87 = vmatprep.subr.mxu0 0.0
    %88 = vmatpush1.msra.mxu0 %v52
    %89 = vmatprep.subr.mxu0 0.0
    %90 = vmatpush1.msra.mxu0 %v53
    %91 = vmatprep.subr.mxu0 0.0
    %92 = vmatpush1.msra.mxu0 %v54
    %93 = vmatprep.subr.mxu0 0.0
    %94 = vmatpush1.msra.mxu0 %v55
    %95 = vmatprep.subr.mxu0 0.0
    %96 = vmatpush1.msra.mxu0 %v56
    %97 = vmatprep.subr.mxu0 0.0
    %98 = vmatpush1.msra.mxu0 %v57
    %99 = vmatprep.subr.mxu0 0.0
    %100 = vmatpush1.msra.mxu0 %v58
    %101 = vmatprep.subr.mxu0 0.0
    %102 = vmatpush1.msra.mxu0 %v59
    %103 = vmatprep.subr.mxu0 0.0
    %104 = vmatpush1.msra.mxu0 %v60
    %105 = vmatprep.subr.mxu0 0.0
    %106 = vmatpush1.msra.mxu0 %v61
    %107 = vmatprep.subr.mxu0 0.0
    %108 = vmatpush1.msra.mxu0 %v62
    %109 = vmatprep.subr.mxu0 0.0
    %110 = vmatpush1.msra.mxu0 %v63
    %111 = vmatprep.subr.mxu0 0.0
    %112 = vmatpush1.msra.mxu0 %v64
    %113 = vmatprep.subr.mxu0 0.0
    %114 = vmatpush1.msra.mxu0 %v65
    %115 = vmatprep.subr.mxu0 0.0
    %116 = vmatpush1.msra.mxu0 %v66
    %117 = vmatprep.subr.mxu0 0.0
    %118 = vmatpush1.msra.mxu0 %v67
    %119 = vmatprep.subr.mxu0 0.0
    %120 = vmatpush1.msra.mxu0 %v68
    %121 = vmatprep.subr.mxu0 0.0
    %122 = vmatpush1.msra.mxu0 %v69
    %123 = vmatprep.subr.mxu0 0.0
    %124 = vmatpush1.msra.mxu0 %v70
    %125 = vmatprep.subr.mxu0 0.0
    %126 = vmatpush1.msra.mxu0 %v71
    %127 = vmatprep.subr.mxu0 0.0
    %128 = vmatpush1.msra.mxu0 %v72
    %129 = vmatprep.subr.mxu0 0.0
    %130 = vmatpush1.msra.mxu0 %v73
    %131 = vmatprep.subr.mxu0 0.0
    %132 = vmatpush1.msra.mxu0 %v74
    %133 = vmatprep.subr.mxu0 0.0
    %134 = vmatpush1.msra.mxu0 %v75
    %135 = vmatprep.subr.mxu0 0.0
    %136 = vmatpush1.msra.mxu0 %v76
    %137 = vmatprep.subr.mxu0 0.0
    %138 = vmatpush1.msra.mxu0 %v77
    %139 = vmatprep.subr.mxu0 0.0
    %140 = vmatpush1.msra.mxu0 %v78
    %141 = vmatprep.subr.mxu0 0.0
    %142 = vmatpush1.msra.mxu0 %v79
    %143 = vmatprep.subr.mxu0 0.0
    %144 = vmatpush1.msra.mxu0 %v80
    %145 = vmatprep.mubr.f32.mxu0 %v46
    %146 = vmatmul.mubr.f32.gmra.mrb[0].mxu0 %v45
    %v147 = vpop.f32.mrb[0].mxu0
    %v148 = vadd.f32 0.0, %v147
    %v149 = vpop.f32.mrb[0].mxu0
    %150 = vmatprep.mubr.f32.mxu0 %v48
    %151 = vmatmul.mubr.f32.gmra.mrb[0].mxu0 %v47
    %v152 = vpop.f32.mrb[0].mxu0
    %v153 = vadd.f32 0.0, %v152
    %v154 = vpop.f32.mrb[0].mxu0
    %155 = vdwg.mxu0
    %156 = vst [vmem:[#allocation5] sm:$0xff] %v148
    %157 = vst [vmem:[#allocation5 + $0x8] sm:$0xff] %v153
    // Predicated region
    $region14: #{tpu_custom_call.1} parent=1 // pred_check
      _
    $region15: #{tpu_custom_call.1} parent=1 // pred_check_branch
      %159 = sbr.rel (0) target = $region17
    $region16: #{tpu_custom_call.1} parent=1 // pred_region
      %s161 = ssub.s32 256, 256
      %162 = vsyncadd [#allocation4], %s161
      %s163 = sshll.u32 [#allocation5], 4
      %s164 = int_to_ptr.vmem [resolvable:$true] %s163
      %169 = dma.vmem_to_hbm [thread:$0]  %s164, 256, %s2, [#allocation4], 128, 128, 8
    $region17: #{tpu_custom_call.1} parent=1 // pred_fallthru
      _
    // Predicated region
    $region18: #{tpu_custom_call.1} parent=1 // pred_check
      _
    $region19: #{tpu_custom_call.1} parent=1 // pred_check_branch
      %171 = sbr.rel (0) target = $region21
    $region20: #{tpu_custom_call.1} parent=1 // pred_region
      %172 = dma.done [#allocation4], 256
    $region21: #{tpu_custom_call.1} parent=1 // pred_fallthru
      _
    %173 = vsyncpa [#allocation3], 1
    %174 = vsyncpa [#allocation4], 1

</llo_original>
